<compile_context>
chip_gen: v7x
topology: tpu7x:2x2x1
jax: 0.10.0
libtpu: 0.0.40
codegen_flags: <defaults>
</compile_context>

<pallas_src>
import functools

import numpy as np
import jax
import jax.numpy as jnp
from jax.experimental import pallas as pl
from jax.experimental.pallas import tpu as pltpu

LANE = 128


def _round_up(x, m):
    return ((x + m - 1) // m) * m


def _cdiv(a, b):
    return -(-a // b)


# ---------------------------------------------------------------------------
# Generation-aware sizing + Buffered(1) capability probe
# ---------------------------------------------------------------------------
@functools.lru_cache(maxsize=None)
def _vmem_capacity_bytes():
    try:
        cap = int(pltpu.get_tpu_info().vmem_capacity_bytes)
        if cap > 0:
            return cap
    except Exception:
        pass
    return 64 * 1024 * 1024          # conservative (v7x-sized) fallback


def _vmem_limit_bytes():
    # ~75% of physical VMEM (48 MiB on v7x, capped at 100 MiB on v5e/v6e).
    return min(int(_vmem_capacity_bytes() * 3 // 4), 100 * 1024 * 1024)


def _default_tm():
    # Bigger row tiles on 128 MiB parts (v5e/v6e), tighter on 64 MiB v7x.
    return 256 if _vmem_capacity_bytes() <= 64 * 1024 * 1024 else 512


def _conv2_target_rows():
    return 256 if _vmem_capacity_bytes() <= 64 * 1024 * 1024 else 512


@functools.lru_cache(maxsize=None)
def _buffered_ok():
    """Probe whether pipeline_mode=pl.Buffered(1) is supported end-to-end."""
    try:
        spec = pl.BlockSpec((8, 128), lambda i: (0, 0), pipeline_mode=pl.Buffered(1))

        def k(x_ref, o_ref):
            o_ref[...] = x_ref[...] * 2.0

        f = pl.pallas_call(
            k,
            out_shape=jax.ShapeDtypeStruct((16, 128), jnp.float32),
            grid=(2,),
            in_specs=[spec],
            out_specs=pl.BlockSpec((8, 128), lambda i: (i, 0)),
        )
        jax.block_until_ready(f(jnp.ones((8, 128), jnp.float32)))
        return True
    except Exception:
        return False


def _const_spec(shape, index_map):
    """BlockSpec for grid-invariant operands (weights / bias): single-buffered."""
    if _buffered_ok():
        return pl.BlockSpec(shape, index_map, pipeline_mode=pl.Buffered(1))
    return pl.BlockSpec(shape, index_map)


def _choose_m_tiling(m, tm_target):
    """cdiv-style M tiling: padding <= 8 rows per tile; >=2 tiles when possible."""
    mp8 = _round_up(m, 8)
    g = max(1, _cdiv(mp8, tm_target))
    if g == 1 and mp8 >= 16:          # give both v7x TensorCores / pipeline work
        g = 2
    tm_e = _round_up(_cdiv(mp8, g), 8)
    mp = tm_e * g
    return mp, tm_e


def _choose_h_tile(h_out, wq, target_rows, max_unroll=32):
    """Largest divisor of h_out whose tile (th*wq rows) fits the row budget."""
    best = 1
    for th in range(1, min(h_out, max_unroll) + 1):
        if h_out % th == 0 and th * wq <= target_rows:
            best = th
    return best


# ---------------------------------------------------------------------------
# Pallas kernels
# ---------------------------------------------------------------------------
def _mm_bias_kernel(x_ref, w_ref, b_ref, o_ref, *, relu):
    # x: (tm, K) bf16, w: (K, N) bf16 (BN scale pre-folded), b: (1, N) f32
    acc = jnp.dot(x_ref[...], w_ref[...], preferred_element_type=jnp.float32)
    out = acc + b_ref[...]
    if relu:
        out = jnp.maximum(out, 0.0)
    o_ref[...] = out.astype(o_ref.dtype)


def _mm_bias_resid_relu_kernel(x_ref, w_ref, b_ref, r_ref, o_ref):
    # conv3 + identity shortcut: relu(x@w + b + resid), resid read as bf16
    acc = jnp.dot(x_ref[...], w_ref[...], preferred_element_type=jnp.float32)
    out = acc + b_ref[...] + r_ref[...].astype(jnp.float32)
    o_ref[...] = jnp.maximum(out, 0.0).astype(o_ref.dtype)


def _mm2_bias_add_relu_kernel(x_ref, w_ref, b_ref, xs_ref, ws_ref, bs_ref, o_ref):
    # conv3 + projection shortcut conv + add + relu, fully fused
    main = jnp.dot(x_ref[...], w_ref[...], preferred_element_type=jnp.float32) + b_ref[...]
    sc = jnp.dot(xs_ref[...], ws_ref[...], preferred_element_type=jnp.float32) + bs_ref[...]
    o_ref[...] = jnp.maximum(main + sc, 0.0).astype(o_ref.dtype)


def _conv3x3_bias_relu_kernel(x_ref, w_ref, b_ref, o_ref, *,
                              taps, tile_rows, th, wq, w_out):
    # x_ref: (s*s, flat_len, Cin) phase-decomposed flat rows for one image,
    #        resident across the row-tile grid axis (index_map depends on b only).
    # w_ref: (9, Cin, Cout) bf16 (BN scale pre-folded); b_ref: (1, Cout) f32.
    # o_ref: (th, w_out, Cout) -- one tile of th output image rows.
    row0 = pl.program_id(1) * tile_rows
    cout = o_ref.shape[-1]
    acc = jnp.zeros((tile_rows, cout), jnp.float32)     # bounded per-tile accumulator
    for t, (phase, off) in enumerate(taps):
        xt = x_ref[phase, pl.ds(row0 + off, tile_rows), :]
        acc = acc + jnp.dot(xt, w_ref[t], preferred_element_type=jnp.float32)
    out = jnp.maximum(acc + b_ref[...], 0.0).astype(o_ref.dtype)
    # Strip the (wq - w_out) junk columns of the flat-row layout at store time
    # so downstream kernels consume a dense (N*H_out*W_out, Cout) activation.
    for r in range(th):
        o_ref[r, :, :] = out[r * wq:r * wq + w_out, :]


# ---------------------------------------------------------------------------
# Kernel wrappers
# ---------------------------------------------------------------------------
def matmul_bias(x, w, bias, *, relu, out_dtype, tm=None):
    m, k = x.shape
    n_out = w.shape[1]
    tm = tm or _default_tm()
    mp, tm_e = _choose_m_tiling(m, tm)
    if mp != m:
        x = jnp.pad(x, ((0, mp - m), (0, 0)))
    out = pl.pallas_call(
        functools.partial(_mm_bias_kernel, relu=relu),
        out_shape=jax.ShapeDtypeStruct((mp, n_out), out_dtype),
        grid_spec=pltpu.PrefetchScalarGridSpec(
            num_scalar_prefetch=0,
            grid=(mp // tm_e,),
            in_specs=[
                pl.BlockSpec((tm_e, k), lambda i: (i, 0)),
                _const_spec((k, n_out), lambda i: (0, 0)),
                _const_spec((1, n_out), lambda i: (0, 0)),
            ],
            out_specs=pl.BlockSpec((tm_e, n_out), lambda i: (i, 0)),
        ),
        compiler_params=pltpu.CompilerParams(
            dimension_semantics=("parallel",),
            vmem_limit_bytes=_vmem_limit_bytes()),
    )(x, w, bias)
    return out[:m] if mp != m else out


def matmul_bias_add_relu(x, w, bias, resid, *, out_dtype, tm=None):
    m, k = x.shape
    n_out = w.shape[1]
    tm = tm or _default_tm()
    mp, tm_e = _choose_m_tiling(m, tm)
    if mp != m:
        x = jnp.pad(x, ((0, mp - m), (0, 0)))
        resid = jnp.pad(resid, ((0, mp - m), (0, 0)))
    out = pl.pallas_call(
        _mm_bias_resid_relu_kernel,
        out_shape=jax.ShapeDtypeStruct((mp, n_out), out_dtype),
        grid_spec=pltpu.PrefetchScalarGridSpec(
            num_scalar_prefetch=0,
            grid=(mp // tm_e,),
            in_specs=[
                pl.BlockSpec((tm_e, k), lambda i: (i, 0)),
                _const_spec((k, n_out), lambda i: (0, 0)),
                _const_spec((1, n_out), lambda i: (0, 0)),
                pl.BlockSpec((tm_e, n_out), lambda i: (i, 0)),
            ],
            out_specs=pl.BlockSpec((tm_e, n_out), lambda i: (i, 0)),
        ),
        compiler_params=pltpu.CompilerParams(
            dimension_semantics=("parallel",),
            vmem_limit_bytes=_vmem_limit_bytes()),
    )(x, w, bias, resid)
    return out[:m] if mp != m else out


def matmul_bias_dual_add_relu(x, w, bias, xs, ws, sbias, *, out_dtype, tm=None):
    m, k = x.shape
    n_out = w.shape[1]
    ks = ws.shape[0]
    tm = tm or _default_tm()
    mp, tm_e = _choose_m_tiling(m, tm)
    if mp != m:
        x = jnp.pad(x, ((0, mp - m), (0, 0)))
        xs = jnp.pad(xs, ((0, mp - m), (0, 0)))
    out = pl.pallas_call(
        _mm2_bias_add_relu_kernel,
        out_shape=jax.ShapeDtypeStruct((mp, n_out), out_dtype),
        grid_spec=pltpu.PrefetchScalarGridSpec(
            num_scalar_prefetch=0,
            grid=(mp // tm_e,),
            in_specs=[
                pl.BlockSpec((tm_e, k), lambda i: (i, 0)),
                _const_spec((k, n_out), lambda i: (0, 0)),
                _const_spec((1, n_out), lambda i: (0, 0)),
                pl.BlockSpec((tm_e, ks), lambda i: (i, 0)),
                _const_spec((ks, n_out), lambda i: (0, 0)),
                _const_spec((1, n_out), lambda i: (0, 0)),
            ],
            out_specs=pl.BlockSpec((tm_e, n_out), lambda i: (i, 0)),
        ),
        compiler_params=pltpu.CompilerParams(
            dimension_semantics=("parallel",),
            vmem_limit_bytes=_vmem_limit_bytes()),
    )(x, w, bias, xs, ws, sbias)
    return out[:m] if mp != m else out


def _phase_decompose(x_nhwc, stride):
    """Pad (1 px) + split into stride*stride spatial phases, flattened to rows.

    x2[n, p, a*wq + b, c] == padded[n, a*stride + p//stride, b*stride + p%stride, c]
    Tap (kh, kw) of a 3x3/pad-1 conv on output row-major position m reads
    x2[n, phase, m + row_offset, :].
    """
    n, h, w, c = x_nhwc.shape
    s = stride
    h_out = (h - 1) // s + 1
    w_out = (w - 1) // s + 1
    xp = jnp.pad(x_nhwc, ((0, 0), (1, 1), (1, 1), (0, 0)))
    hp, wp = h + 2, w + 2
    hp2, wp2 = _round_up(hp, s), _round_up(wp, s)
    xp = jnp.pad(xp, ((0, 0), (0, hp2 - hp), (0, wp2 - wp), (0, 0)))
    hq, wq = hp2 // s, wp2 // s
    xph = xp.reshape(n, hq, s, wq, s, c).transpose(0, 2, 4, 1, 3, 5)
    x2 = xph.reshape(n, s * s, hq * wq, c)
    taps = []
    for kh in range(3):
        for kw in range(3):
            phase = (kh % s) * s + (kw % s)
            off = (kh // s) * wq + (kw // s)
            taps.append((phase, off))
    max_off = max(off for _, off in taps)
    flat_len = _round_up(max(hq * wq, h_out * wq + max_off), 8)
    if flat_len != hq * wq:
        x2 = jnp.pad(x2, ((0, 0), (0, 0), (0, flat_len - hq * wq), (0, 0)))
    return x2, tuple(taps), h_out, w_out, wq


def conv3x3_bias_relu(x_nhwc, w_taps, bias, *, stride, out_dtype):
    """Fused 3x3 / pad=1 / stride conv + bias + ReLU, row-tiled, no HBM im2col.

    x_nhwc: (N, H, W, C) bf16 (C lane-padded); w_taps: (9, C, Cout) bf16.
    Returns a dense (N, H_out, W_out, Cout) activation (junk columns stripped).
    """
    n = x_nhwc.shape[0]
    c = x_nhwc.shape[-1]
    cout = w_taps.shape[-1]
    s = stride
    x2, taps, h_out, w_out, wq = _phase_decompose(x_nhwc, s)
    flat_len = x2.shape[2]
    th = _choose_h_tile(h_out, wq, _conv2_target_rows())
    tile_rows = th * wq
    n_tiles = h_out // th
    out = pl.pallas_call(
        functools.partial(_conv3x3_bias_relu_kernel, taps=taps,
                          tile_rows=tile_rows, th=th, wq=wq, w_out=w_out),
        out_shape=jax.ShapeDtypeStruct((n, h_out, w_out, cout), out_dtype),
        grid_spec=pltpu.PrefetchScalarGridSpec(
            num_scalar_prefetch=0,
            grid=(n, n_tiles),
            in_specs=[
                # whole phase-decomposed image, resident across the tile axis
                pl.BlockSpec((None, s * s, flat_len, c), lambda b, j: (b, 0, 0, 0)),
                _const_spec((9, c, cout), lambda b, j: (0, 0, 0)),
                _const_spec((1, cout), lambda b, j: (0, 0)),
            ],
            out_specs=pl.BlockSpec((None, th, w_out, cout), lambda b, j: (b, j, 0, 0)),
        ),
        compiler_params=pltpu.CompilerParams(
            dimension_semantics=("parallel", "parallel"),
            vmem_limit_bytes=_vmem_limit_bytes()),
    )(x2, w_taps, bias)
    return out, h_out, w_out


# ---------------------------------------------------------------------------
# Parameters: spectral norm (miyato), eval-mode BN folding
# ---------------------------------------------------------------------------
def spectral_normalize(w, n_iter=20):
    """Divide the conv weight (viewed as (out, in*kh*kw)) by its top singular value."""
    out_c = w.shape[0]
    mat = w.reshape(out_c, -1)
    v = jnp.ones((mat.shape[1],), jnp.float32) / jnp.sqrt(float(mat.shape[1]))
    u = jnp.ones((out_c,), jnp.float32) / jnp.sqrt(float(out_c))
    for _ in range(n_iter):
        u = mat @ v
        u = u / (jnp.linalg.norm(u) + 1e-12)
        v = mat.T @ u
        v = v / (jnp.linalg.norm(v) + 1e-12)
    sigma = u @ (mat @ v)
    return w / sigma


def bn_fold(gamma, beta, mean, var, eps=1e-5):
    scale = gamma / jnp.sqrt(var + eps)
    bias = beta - mean * scale
    return scale, bias


def init_params(key, in_planes, planes, stride, expansion=4):
    keys = jax.random.split(key, 8)

    def conv_w(k, out_c, in_c, kh, kw):
        fan_in = in_c * kh * kw
        w = jax.random.normal(k, (out_c, in_c, kh, kw), jnp.float32) / jnp.sqrt(fan_in)
        return spectral_normalize(w)

    def bn_p(k, c):
        k1, k2, k3, k4 = jax.random.split(k, 4)
        gamma = 1.0 + 0.1 * jax.random.normal(k1, (c,), jnp.float32)
        beta = 0.1 * jax.random.normal(k2, (c,), jnp.float32)
        mean = 0.1 * jax.random.normal(k3, (c,), jnp.float32)
        var = jnp.abs(1.0 + 0.1 * jax.random.normal(k4, (c,), jnp.float32))
        return bn_fold(gamma, beta, mean, var)

    p = {
        "w1": conv_w(keys[0], planes, in_planes, 1, 1),
        "bn1": bn_p(keys[1], planes),
        "w2": conv_w(keys[2], planes, planes, 3, 3),
        "bn2": bn_p(keys[3], planes),
        "w3": conv_w(keys[4], expansion * planes, planes, 1, 1),
        "bn3": bn_p(keys[5], expansion * planes),
        "has_shortcut": (stride != 1 or in_planes != expansion * planes),
    }
    if p["has_shortcut"]:
        p["ws"] = conv_w(keys[6], expansion * planes, in_planes, 1, 1)
        p["bns"] = bn_p(keys[7], expansion * planes)
    return p


# ---------------------------------------------------------------------------
# Bottleneck forward (3 fused Pallas kernels on the hot path)
# ---------------------------------------------------------------------------
def _fold_pad_w(w_mat, scale, k_pad, n_pad):
    """(K, N) weight * per-output scale -> bf16, zero-padded to (k_pad, n_pad)."""
    k, n_out = w_mat.shape
    wf = (w_mat * scale[None, :]).astype(jnp.bfloat16)
    return jnp.pad(wf, ((0, k_pad - k), (0, n_pad - n_out)))


def _pad_bias(bias, n_pad):
    return jnp.pad(bias, (0, n_pad - bias.shape[0])).reshape(1, n_pad).astype(jnp.float32)


def bottleneck_forward(params, x_nchw, stride, expansion=4):
    n, c, h, w = x_nchw.shape
    planes = params["w1"].shape[0]
    out_ch = expansion * planes
    cp = _round_up(c, LANE)
    pp = _round_up(planes, LANE)
    op = _round_up(out_ch, LANE)

    x_nhwc = jnp.transpose(x_nchw, (0, 2, 3, 1))
    x_bf16 = jnp.pad(x_nhwc, ((0, 0), (0, 0), (0, 0), (0, cp - c))).astype(jnp.bfloat16)

    s1, b1 = params["bn1"]
    s2, b2 = params["bn2"]
    s3, b3 = params["bn3"]

    # conv1 (1x1) + bn1(scale folded) + relu
    w1f = _fold_pad_w(params["w1"].reshape(planes, c).T, s1, cp, pp)
    out1 = matmul_bias(x_bf16.reshape(n * h * w, cp), w1f, _pad_bias(b1, pp),
                       relu=True, out_dtype=jnp.bfloat16)

    # conv2 (3x3, stride, pad=1) + bn2 + relu — row-tiled, no HBM im2col
    w2 = jnp.transpose(params["w2"], (2, 3, 1, 0)).reshape(9, planes, planes)
    w2f = jnp.pad((w2 * s2[None, None, :]).astype(jnp.bfloat16),
                  ((0, 0), (0, pp - planes), (0, pp - planes)))
    out2, h_out, w_out = conv3x3_bias_relu(out1.reshape(n, h, w, pp), w2f,
                                           _pad_bias(b2, pp),
                                           stride=stride, out_dtype=jnp.bfloat16)
    out2_rows = out2.reshape(n * h_out * w_out, pp)       # dense, no XLA repack

    # conv3 (1x1) + bn3 + shortcut + residual add + relu — one fused kernel
    w3f = _fold_pad_w(params["w3"].reshape(out_ch, planes).T, s3, pp, op)
    b3p = _pad_bias(b3, op)

    if params["has_shortcut"]:
        ss, bs = params["bns"]
        wsf = _fold_pad_w(params["ws"].reshape(out_ch, c).T, ss, cp, op)
        xs = x_bf16[:, ::stride, ::stride, :].reshape(n * h_out * w_out, cp)
        out = matmul_bias_dual_add_relu(out2_rows, w3f, b3p, xs, wsf,
                                        _pad_bias(bs, op), out_dtype=jnp.bfloat16)
    else:
        resid = x_bf16.reshape(n * h * w, op)              # identity: op == cp, bf16
        out = matmul_bias_add_relu(out2_rows, w3f, b3p, resid, out_dtype=jnp.bfloat16)

    out = out.reshape(n, h_out, w_out, op)[:, :, :, :out_ch]
    return jnp.transpose(out, (0, 3, 1, 2))                # bf16 NCHW


# ---------------------------------------------------------------------------
# Pure-JAX reference for validation
# ---------------------------------------------------------------------------
def reference_forward(params, x, stride):
    def conv(x, w, s=1, p=0):
        return jax.lax.conv_general_dilated(
            x, w, (s, s), [(p, p), (p, p)],
            dimension_numbers=("NCHW", "OIHW", "NCHW"))

    def bn(x, sb):
        s, b = sb
        return x * s[None, :, None, None] + b[None, :, None, None]

    out = jax.nn.relu(bn(conv(x, params["w1"]), params["bn1"]))
    out = jax.nn.relu(bn(conv(out, params["w2"], stride, 1), params["bn2"]))
    out = bn(conv(out, params["w3"]), params["bn3"])
    sc = bn(conv(x, params["ws"], stride, 0), params["bns"]) if params["has_shortcut"] else x
    return jax.nn.relu(out + sc)


if __name__ == "__main__":
    key = jax.random.PRNGKey(0)
    kx, kp, kx2, kp2 = jax.random.split(key, 4)

    # Config A: stride 2 -> projection shortcut (fused dual-matmul epilogue).
    in_planes, planes, stride = 4, 4, 2
    x = jax.random.normal(kx, (2, in_planes, 16, 16), jnp.float32)
    params = init_params(kp, in_planes, planes, stride)
    out = jax.block_until_ready(bottleneck_forward(params, x, stride))
    ref = reference_forward(params, x, stride)
    assert out.shape == (2, 4 * planes, 8, 8), out.shape
    np.testing.assert_allclose(np.asarray(out.astype(jnp.float32)), np.asarray(ref),
                               atol=5e-2, rtol=5e-2)

    # Config B: stride 1, in_planes == 4*planes -> identity shortcut path.
    in_planes2, planes2, stride2 = 16, 4, 1
    x2 = jax.random.normal(kx2, (2, in_planes2, 16, 16), jnp.float32)
    params2 = init_params(kp2, in_planes2, planes2, stride2)
    out2 = jax.block_until_ready(bottleneck_forward(params2, x2, stride2))
    ref2 = reference_forward(params2, x2, stride2)
    assert out2.shape == (2, 4 * planes2, 16, 16), out2.shape
    np.testing.assert_allclose(np.asarray(out2.astype(jnp.float32)), np.asarray(ref2),
                               atol=5e-2, rtol=5e-2)

    print("KERNEL_OK")
</pallas_src>

<mosaic_0001>
module attributes {stable_mosaic.version = 11 : i64} {
  func.func @k(%arg0: i32, %arg1: memref<8x128xf32, #tpu.memory_space<vmem>>, %arg2: memref<8x128xf32, #tpu.memory_space<vmem>>) attributes {dimension_semantics = [#tpu.dimension_semantics<arbitrary>], iteration_bounds = array<i64: 2>, scalar_prefetch = 0 : i64, scratch_operands = 0 : i64, tpu.core_type = #tpu.core_type<tc>, window_params = [{pipeline_mode = #tpu.pipeline_mode<synchronous>, transform_indices = @transform_0, window_bounds = array<i64: 8, 128>}, {transform_indices = @transform_1, window_bounds = array<i64: 8, 128>}]} {
    %c0 = arith.constant 0 : index
    %c0_0 = arith.constant 0 : index
    %0 = vector.load %arg1[%c0, %c0_0] : memref<8x128xf32, #tpu.memory_space<vmem>>, vector<8x128xf32>
    %cst = arith.constant 2.000000e+00 : f32
    %1 = vector.broadcast %cst : f32 to vector<8x128xf32>
    %2 = arith.mulf %0, %1 : vector<8x128xf32>
    %c0_1 = arith.constant 0 : index
    %c0_2 = arith.constant 0 : index
    %3 = vector.load %arg2[%c0_1, %c0_2] : memref<8x128xf32, #tpu.memory_space<vmem>>, vector<8x128xf32>
    tpu.vector_store %arg2[%c0_1, %c0_2], %2 {strides = array<i32>} : memref<8x128xf32, #tpu.memory_space<vmem>>, vector<8x128xf32>,
    return
  }
  func.func @transform_0(%arg0: i32) -> (i32, i32) {
    %c0_i32 = arith.constant 0 : i32
    %c0_i32_0 = arith.constant 0 : i32
    %c0_i32_1 = arith.constant 0 : i32
    return %c0_i32, %c0_i32_0 : i32, i32
  }
  func.func @transform_1(%arg0: i32) -> (i32, i32) {
    %c0_i32 = arith.constant 0 : i32
    %c0_i32_0 = arith.constant 0 : i32
    return %arg0, %c0_i32 : i32, i32
  }
}

module attributes {stable_mosaic.version = 11 : i64} {
  func.func @_mm_bias_kernel(%arg0: i32, %arg1: memref<256x128xbf16, #tpu.memory_space<vmem>>, %arg2: memref<128x128xbf16, #tpu.memory_space<vmem>>, %arg3: memref<1x128xf32, #tpu.memory_space<vmem>>, %arg4: memref<256x128xbf16, #tpu.memory_space<vmem>>) attributes {dimension_semantics = [#tpu.dimension_semantics<parallel>], iteration_bounds = array<i64: 2>, scalar_prefetch = 0 : i64, scratch_operands = 0 : i64, tpu.core_type = #tpu.core_type<tc>, window_params = [{transform_indices = @transform_0, window_bounds = array<i64: 256, 128>}, {pipeline_mode = #tpu.pipeline_mode<synchronous>, transform_indices = @transform_1, window_bounds = array<i64: 128, 128>}, {pipeline_mode = #tpu.pipeline_mode<synchronous>, transform_indices = @transform_2, window_bounds = array<i64: 1, 128>}, {transform_indices = @transform_3, window_bounds = array<i64: 256, 128>}]} {
    %c0 = arith.constant 0 : index
    %c0_0 = arith.constant 0 : index
    %0 = vector.load %arg1[%c0, %c0_0] : memref<256x128xbf16, #tpu.memory_space<vmem>>, vector<256x128xbf16>
    %c0_1 = arith.constant 0 : index
    %c0_2 = arith.constant 0 : index
    %1 = vector.load %arg2[%c0_1, %c0_2] : memref<128x128xbf16, #tpu.memory_space<vmem>>, vector<128x128xbf16>
    %cst = arith.constant dense<0.000000e+00> : vector<256x128xf32>
    %2 = tpu.matmul %0, %1, %cst {dimension_numbers = #tpu.dot_dimension_numbers<[1], [0], [0], [1], [0, 0, 1, 1], [], []>} : vector<256x128xbf16>, vector<128x128xbf16>, vector<256x128xf32> -> vector<256x128xf32>
    %c0_3 = arith.constant 0 : index
    %c0_4 = arith.constant 0 : index
    %3 = vector.load %arg3[%c0_3, %c0_4] : memref<1x128xf32, #tpu.memory_space<vmem>>, vector<1x128xf32>
    %4 = vector.broadcast %3 : vector<1x128xf32> to vector<256x128xf32>
    %5 = arith.addf %2, %4 : vector<256x128xf32>
    %cst_5 = arith.constant 0.000000e+00 : f32
    %6 = vector.broadcast %cst_5 : f32 to vector<256x128xf32>
    %7 = arith.maximumf %5, %6 : vector<256x128xf32>
    %8 = arith.truncf %7 : vector<256x128xf32> to vector<256x128xbf16>
    %c0_6 = arith.constant 0 : index
    %c0_7 = arith.constant 0 : index
    %9 = vector.load %arg4[%c0_6, %c0_7] : memref<256x128xbf16, #tpu.memory_space<vmem>>, vector<256x128xbf16>
    tpu.vector_store %arg4[%c0_6, %c0_7], %8 {strides = array<i32>} : memref<256x128xbf16, #tpu.memory_space<vmem>>, vector<256x128xbf16>,
    return
  }
  func.func @transform_0(%arg0: i32) -> (i32, i32) {
    %c0_i32 = arith.constant 0 : i32
    %c0_i32_0 = arith.constant 0 : i32
    return %arg0, %c0_i32 : i32, i32
  }
  func.func @transform_1(%arg0: i32) -> (i32, i32) {
    %c0_i32 = arith.constant 0 : i32
    %c0_i32_0 = arith.constant 0 : i32
    %c0_i32_1 = arith.constant 0 : i32
    return %c0_i32, %c0_i32_0 : i32, i32
  }
  func.func @transform_2(%arg0: i32) -> (i32, i32) {
    %c0_i32 = arith.constant 0 : i32
    %c0_i32_0 = arith.constant 0 : i32
    %c0_i32_1 = arith.constant 0 : i32
    return %c0_i32, %c0_i32_0 : i32, i32
  }
  func.func @transform_3(%arg0: i32) -> (i32, i32) {
    %c0_i32 = arith.constant 0 : i32
    %c0_i32_0 = arith.constant 0 : i32
    return %arg0, %c0_i32 : i32, i32
  }
}

</mosaic_0001>

<llo_original>
// kernel: tpu_custom_call.1
$region0: #{tpu_custom_call.1}
  #allocation0 [shape = 'u32[]', space=smem, size = 0x4, offset = 0x4, fixed_abs, tag = 'smem constant byte address 0x4 - core index']
  #allocation1 [shape = 'u32[144,128]{1,0:T(1,128)}', space=vmem, size = 0x12000, scoped, tag = 'internal scratch']
  %s0 = inlined_call_operand.hbm [shape: f32[8,128], index: 0, kind: input, shape index: {}]
  %s1 = inlined_call_operand.hbm [shape: f32[16,128], index: 1, kind: output, shape index: {}]
  %s2 = sld [smem:[#allocation0]]
  $region41: #{tpu_custom_call.1} parent=0
    _
  %s4 = ssub.s32 1, %s2
  %s5 = scalar_select 0, %s4, %s2
  $region1: #{tpu_custom_call.1} parent=0
    #allocation2 [shape = 'u8[4096]{0}', space=vmem, size = 0x1000, scoped, tag = 'input window, operand 0, single buffered']
    #allocation3 [shape = 's32[2]{0}', space=sflag, size = 0x8, scoped, tag = 'scoped memory for tpu_custom_call.1']
    #allocation4 [shape = 's32[2]{0}', space=sflag, size = 0x8, scoped, tag = 'scoped memory for tpu_custom_call.1']
    #allocation5 [shape = 'u8[8192]{0}', space=vmem, size = 0x2000, scoped, tag = 'output window, operand 0']
    %6 = vsyncpa [#allocation3], 0
    %7 = vsyncpa [#allocation4], 0
    %s8 = scalar_lea.sflag [#allocation4], 1
    %9 = vsyncpa %s8, 0
    loop: start=0, step=1, limit=4
    $region2: #{tpu_custom_call.1} parent=1 // loop_pre_header
      _
    $region3: #{tpu_custom_call.1} parent=1 // loop_header
      %s11 = sphi 0, %s15
      %p12 = scmp.ge.s32.totalorder %s11, 4
      %s19 = sphi 0, %s19
      %s21 = sphi 0, %s19
      %s22 = sphi 0, %s21
      %s36 = sphi 0, %s22
      %s42 = sphi 0, %s44
      %s45 = sphi 0, %s42
      %s46 = sphi 0, %s45
      %s62 = sphi 0, %s46
    $region4: #{tpu_custom_call.1} parent=1 // loop_header_branch
      %14 = sbr.rel (%p12) target = $region8
    $region5: #{tpu_custom_call.1} parent=1 // loop_body
      %s16 = ssub.s32 %s11, 1
      %s17 = ssub.s32 %s11, 2
      %s18 = sadd.s32 %s11, 1
      %s20 = sadd.s32 %s19, 1
      %p23 = scmp.eq.s32.totalorder %s11, 1
      %p24 = scmp.ne.s32.totalorder %s19, %s21
      %p25 = scmp.eq.s32.totalorder %s11, 0
      %p26 = por %p24, %p25
      %p27 = scmp.ne.s32.totalorder %s19, %s21
      %p28 = scmp.eq.s32.totalorder %s16, 1
      %p29 = por %p27, %p28
      %p30 = scmp.ne.s32.totalorder %s21, %s22
      %p31 = scmp.eq.s32.totalorder %s16, 0
      %p32 = por %p30, %p31
      %p33 = scmp.ne.s32.totalorder %s21, %s22
      %p34 = scmp.eq.s32.totalorder %s17, 1
      %p35 = por %p33, %p34
      %p37 = scmp.ne.s32.totalorder %s22, %s36
      %p38 = scmp.eq.s32.totalorder %s17, 0
      %p39 = por %p37, %p38
      %s40 = ssub.s32 %s11, %s18
      %p41 = scmp.eq.s32.totalorder %s40, 0
      %s43 = sadd.s32 %s42, 1
      %s44 = scalar_select %p41, %s42, %s43
      %p47 = pneg %p41
      %p48 = scmp.eq.s32.totalorder %s11, 1
      %p49 = por %p47, %p48
      %p50 = scmp.ne.s32.totalorder %s42, %s45
      %p51 = scmp.eq.s32.totalorder %s11, 0
      %p52 = por %p50, %p51
      %p53 = scmp.ne.s32.totalorder %s42, %s45
      %p54 = scmp.eq.s32.totalorder %s16, 1
      %p55 = por %p53, %p54
      %p56 = scmp.ne.s32.totalorder %s45, %s46
      %p57 = scmp.eq.s32.totalorder %s16, 0
      %p58 = por %p56, %p57
      %p59 = scmp.ne.s32.totalorder %s45, %s46
      %p60 = scmp.eq.s32.totalorder %s17, 1
      %p61 = por %p59, %p60
      %p63 = scmp.ne.s32.totalorder %s46, %s62
      %p64 = scmp.eq.s32.totalorder %s17, 0
      %p65 = por %p63, %p64
      %p66 = scmp.le.s32.totalorder 1, %s11
      %p67 = scmp.lt.s32.totalorder %s11, 3
      %p68 = pnand %p66, %p67
      %p69 = pneg %p68
      // Predicated region
      $region9: #{tpu_custom_call.1} parent=5 // pred_check
        _
      $region10: #{tpu_custom_call.1} parent=5 // pred_check_branch
        %71 = sbr.rel (%p68) target = $region12
      $region11: #{tpu_custom_call.1} parent=5 // pred_region
        %s72 = ssub.s32 %s11, 1
        // Predicated region
        $region13: #{tpu_custom_call.1} parent=11 // pred_check
          %p73 = pneg %p32
        $region14: #{tpu_custom_call.1} parent=11 // pred_check_branch
          %75 = sbr.rel (%p73) target = $region16
        $region15: #{tpu_custom_call.1} parent=11 // pred_region
          %s77 = ssub.s32 128, 128
          %78 = vsyncadd [#allocation3], %s77
          %s80 = sshll.u32 [#allocation2], 4
          %s81 = int_to_ptr.vmem [resolvable:$true] %s80
          %83 = dma.hbm_to_vmem [thread:$0]  %s0, 128, %s81, [#allocation3]
        $region16: #{tpu_custom_call.1} parent=11 // pred_fallthru
          _
      $region12: #{tpu_custom_call.1} parent=5 // pred_fallthru
        _
      %p84 = scmp.lt.s32.totalorder %s11, 2
      // Predicated region
      $region17: #{tpu_custom_call.1} parent=5 // pred_check
        %p85 = pneg %p84
      $region18: #{tpu_custom_call.1} parent=5 // pred_check_branch
        %87 = sbr.rel (%p85) target = $region20
      $region19: #{tpu_custom_call.1} parent=5 // pred_region
        _
      $region20: #{tpu_custom_call.1} parent=5 // pred_fallthru
        _
      %p88 = scmp.le.s32.totalorder 1, %s11
      %p89 = scmp.lt.s32.totalorder %s11, 3
      %p90 = pnand %p88, %p89
      %p91 = pneg %p90
      // Predicated region
      $region21: #{tpu_custom_call.1} parent=5 // pred_check
        _
      $region22: #{tpu_custom_call.1} parent=5 // pred_check_branch
        %93 = sbr.rel (%p90) target = $region24
      $region23: #{tpu_custom_call.1} parent=5 // pred_region
        %s94 = ssub.s32 %s11, 1
        // Predicated region
        $region25: #{tpu_custom_call.1} parent=23 // pred_check
          %p95 = pneg %p32
        $region26: #{tpu_custom_call.1} parent=23 // pred_check_branch
          %97 = sbr.rel (%p95) target = $region28
        $region27: #{tpu_custom_call.1} parent=23 // pred_region
          %98 = dma.done [#allocation3], 128
        $region28: #{tpu_custom_call.1} parent=23 // pred_fallthru
          _
        %p99 = pneg %p32
        %p100 = pneg %p29
        %p101 = pneg %p58
        %p102 = pneg %p55
        %s103 = sand.u32 %s45, 1
        %s104 = scalar_lea.sflag [#allocation4], %s103
        %s105 = sand.u32 %s45, 1
        %s106 = smul.addr %s105, 8
        %s107 = scalar_lea.vmem [#allocation5], %s106
        %v108 = vld [vmem:[#allocation2] sm:$0xff]
        %v109 = vmul.f32 %v108, 2.0
        %110 = vst [vmem:[%s107] sm:$0xff] %v109
        %s111 = sand.u32 %s45, 1
        %s112 = scalar_lea.sflag [#allocation4], %s111
        %s113 = sand.u32 %s45, 1
        %s114 = smul.addr %s113, 8
        %s115 = scalar_lea.vmem [#allocation5], %s114
        // Predicated region
        $region29: #{tpu_custom_call.1} parent=23 // pred_check
          %p116 = pneg %p55
        $region30: #{tpu_custom_call.1} parent=23 // pred_check_branch
          %118 = sbr.rel (%p116) target = $region32
        $region31: #{tpu_custom_call.1} parent=23 // pred_region
          %s120 = ssub.s32 128, 128
          %121 = vsyncadd %s112, %s120
          %s122 = smul.addr %s16, 128
          %s123 = scalar_lea.hbm %s1, %s122
          %s125 = sshll.u32 %s115, 4
          %s126 = int_to_ptr.vmem [resolvable:$true] %s125
          %128 = dma.vmem_to_hbm [thread:$0]  %s126, 128, %s123, %s112
        $region32: #{tpu_custom_call.1} parent=23 // pred_fallthru
          _
      $region24: #{tpu_custom_call.1} parent=5 // pred_fallthru
        _
      %p129 = scmp.le.s32.totalorder 2, %s11
      // Predicated region
      $region33: #{tpu_custom_call.1} parent=5 // pred_check
        %p130 = pneg %p129
      $region34: #{tpu_custom_call.1} parent=5 // pred_check_branch
        %132 = sbr.rel (%p130) target = $region36
      $region35: #{tpu_custom_call.1} parent=5 // pred_region
        %s133 = ssub.s32 %s11, 2
        // Predicated region
        $region37: #{tpu_custom_call.1} parent=35 // pred_check
          %p134 = pneg %p61
        $region38: #{tpu_custom_call.1} parent=35 // pred_check_branch
          %136 = sbr.rel (%p134) target = $region40
        $region39: #{tpu_custom_call.1} parent=35 // pred_region
          %s137 = sand.u32 %s46, 1
          %s138 = scalar_lea.sflag [#allocation4], %s137
          %s139 = sand.u32 %s46, 1
          %s140 = smul.addr %s139, 8
          %s141 = scalar_lea.vmem [#allocation5], %s140
          %142 = dma.done %s138, 128
        $region40: #{tpu_custom_call.1} parent=35 // pred_fallthru
          _
      $region36: #{tpu_custom_call.1} parent=5 // pred_fallthru
        _
    $region6: #{tpu_custom_call.1} parent=1 // loop_footer
      %s15 = sadd.s32 1, %s11
    $region7: #{tpu_custom_call.1} parent=1 // loop_footer_branch
      %10 = sbr.rel target = $region3
    $region8: #{tpu_custom_call.1} parent=1 // loop_exit
      _
    %143 = vsyncpa [#allocation3], 1
    %s144 = scalar_lea.sflag [#allocation3], 1
    %145 = vsyncpa %s144, 1
    %146 = vsyncpa [#allocation4], 1
    %s147 = scalar_lea.sflag [#allocation4], 1
    %148 = vsyncpa %s147, 1

// kernel: tpu_custom_call.1
$region0: #{tpu_custom_call.1}
  #allocation0 [shape = 'u32[]', space=smem, size = 0x4, offset = 0x4, fixed_abs, tag = 'smem constant byte address 0x4 - core index']
  #allocation1 [shape = 'u32[144,128]{1,0:T(1,128)}', space=vmem, size = 0x12000, scoped, tag = 'internal scratch']
  %s0 = inlined_call_operand.hbm [shape: bf16[512,128], index: 0, kind: input, shape index: {}]
  %s1 = inlined_call_operand.hbm [shape: bf16[128,128], index: 1, kind: input, shape index: {}]
  %s2 = inlined_call_operand.vmem [shape: f32[1,128], index: 2, kind: input, shape index: {}]
  %s3 = inlined_call_operand.hbm [shape: bf16[512,128], index: 3, kind: output, shape index: {}]
  %s4 = sld [smem:[#allocation0]]
  $region53: #{tpu_custom_call.1} parent=0
    _
  %s6 = ssub.s32 1, %s4
  %s7 = scalar_select 0, %s6, %s4
  $region1: #{tpu_custom_call.1} parent=0
    #allocation2 [shape = 'u8[131072]{0}', space=vmem, size = 0x20000, scoped, tag = 'input window, operand 0']
    #allocation3 [shape = 's32[2]{0}', space=sflag, size = 0x8, scoped, tag = 'scoped memory for tpu_custom_call.1']
    #allocation4 [shape = 's32[2]{0}', space=sflag, size = 0x8, scoped, tag = 'scoped memory for tpu_custom_call.1']
    #allocation5 [shape = 'u8[32768]{0}', space=vmem, size = 0x8000, scoped, tag = 'input window, operand 1, single buffered']
    #allocation6 [shape = 's32[1]{0}', space=sflag, size = 0x4, scoped, tag = 'scoped memory for tpu_custom_call.1']
    #allocation7 [shape = 'u8[131072]{0}', space=vmem, size = 0x20000, scoped, tag = 'output window, operand 0']
    %8 = vsyncpa [#allocation3], 0
    %s9 = scalar_lea.sflag [#allocation3], 1
    %10 = vsyncpa %s9, 0
    %11 = vsyncpa [#allocation6], 0
    %12 = vsyncpa [#allocation4], 0
    %s13 = scalar_lea.sflag [#allocation4], 1
    %14 = vsyncpa %s13, 0
    loop: start=0, step=1, limit=4
    $region2: #{tpu_custom_call.1} parent=1 // loop_pre_header
      _
    $region3: #{tpu_custom_call.1} parent=1 // loop_header
      %s16 = sphi 0, %s20
      %p17 = scmp.ge.s32.totalorder %s16, 4
      %s26 = sphi 0, %s28
      %s29 = sphi 0, %s26
      %s30 = sphi 0, %s29
      %s46 = sphi 0, %s30
      %s50 = sphi 0, %s50
      %s52 = sphi 0, %s50
      %s53 = sphi 0, %s52
      %s67 = sphi 0, %s53
      %s71 = sphi 0, %s71
      %s73 = sphi 0, %s71
      %s74 = sphi 0, %s73
      %s88 = sphi 0, %s74
      %s94 = sphi 0, %s96
      %s97 = sphi 0, %s94
      %s98 = sphi 0, %s97
      %s114 = sphi 0, %s98
    $region4: #{tpu_custom_call.1} parent=1 // loop_header_branch
      %19 = sbr.rel (%p17) target = $region8
    $region5: #{tpu_custom_call.1} parent=1 // loop_body
      %s21 = ssub.s32 %s16, 1
      %s22 = ssub.s32 %s16, 2
      %s23 = sadd.s32 %s16, 1
      %s24 = ssub.s32 %s16, %s23
      %p25 = scmp.eq.s32.totalorder %s24, 0
      %s27 = sadd.s32 %s26, 1
      %s28 = scalar_select %p25, %s26, %s27
      %p31 = pneg %p25
      %p32 = scmp.eq.s32.totalorder %s16, 1
      %p33 = por %p31, %p32
      %p34 = scmp.ne.s32.totalorder %s26, %s29
      %p35 = scmp.eq.s32.totalorder %s16, 0
      %p36 = por %p34, %p35
      %p37 = scmp.ne.s32.totalorder %s26, %s29
      %p38 = scmp.eq.s32.totalorder %s21, 1
      %p39 = por %p37, %p38
      %p40 = scmp.ne.s32.totalorder %s29, %s30
      %p41 = scmp.eq.s32.totalorder %s21, 0
      %p42 = por %p40, %p41
      %p43 = scmp.ne.s32.totalorder %s29, %s30
      %p44 = scmp.eq.s32.totalorder %s22, 1
      %p45 = por %p43, %p44
      %p47 = scmp.ne.s32.totalorder %s30, %s46
      %p48 = scmp.eq.s32.totalorder %s22, 0
      %p49 = por %p47, %p48
      %s51 = sadd.s32 %s50, 1
      %p54 = scmp.eq.s32.totalorder %s16, 1
      %p55 = scmp.ne.s32.totalorder %s50, %s52
      %p56 = scmp.eq.s32.totalorder %s16, 0
      %p57 = por %p55, %p56
      %p58 = scmp.ne.s32.totalorder %s50, %s52
      %p59 = scmp.eq.s32.totalorder %s21, 1
      %p60 = por %p58, %p59
      %p61 = scmp.ne.s32.totalorder %s52, %s53
      %p62 = scmp.eq.s32.totalorder %s21, 0
      %p63 = por %p61, %p62
      %p64 = scmp.ne.s32.totalorder %s52, %s53
      %p65 = scmp.eq.s32.totalorder %s22, 1
      %p66 = por %p64, %p65
      %p68 = scmp.ne.s32.totalorder %s53, %s67
      %p69 = scmp.eq.s32.totalorder %s22, 0
      %p70 = por %p68, %p69
      %s72 = sadd.s32 %s71, 1
      %p75 = scmp.eq.s32.totalorder %s16, 1
      %p76 = scmp.ne.s32.totalorder %s71, %s73
      %p77 = scmp.eq.s32.totalorder %s16, 0
      %p78 = por %p76, %p77
      %p79 = scmp.ne.s32.totalorder %s71, %s73
      %p80 = scmp.eq.s32.totalorder %s21, 1
      %p81 = por %p79, %p80
      %p82 = scmp.ne.s32.totalorder %s73, %s74
      %p83 = scmp.eq.s32.totalorder %s21, 0
      %p84 = por %p82, %p83
      %p85 = scmp.ne.s32.totalorder %s73, %s74
      %p86 = scmp.eq.s32.totalorder %s22, 1
      %p87 = por %p85, %p86
      %p89 = scmp.ne.s32.totalorder %s74, %s88
      %p90 = scmp.eq.s32.totalorder %s22, 0
      %p91 = por %p89, %p90
      %s92 = ssub.s32 %s16, %s23
      %p93 = scmp.eq.s32.totalorder %s92, 0
      %s95 = sadd.s32 %s94, 1
      %s96 = scalar_select %p93, %s94, %s95
      %p99 = pneg %p93
      %p100 = scmp.eq.s32.totalorder %s16, 1
      %p101 = por %p99, %p100
      %p102 = scmp.ne.s32.totalorder %s94, %s97
      %p103 = scmp.eq.s32.totalorder %s16, 0
      %p104 = por %p102, %p103
      %p105 = scmp.ne.s32.totalorder %s94, %s97
      %p106 = scmp.eq.s32.totalorder %s21, 1
      %p107 = por %p105, %p106
      %p108 = scmp.ne.s32.totalorder %s97, %s98
      %p109 = scmp.eq.s32.totalorder %s21, 0
      %p110 = por %p108, %p109
      %p111 = scmp.ne.s32.totalorder %s97, %s98
      %p112 = scmp.eq.s32.totalorder %s22, 1
      %p113 = por %p111, %p112
      %p115 = scmp.ne.s32.totalorder %s98, %s114
      %p116 = scmp.eq.s32.totalorder %s22, 0
      %p117 = por %p115, %p116
      %p118 = scmp.le.s32.totalorder 1, %s16
      %p119 = scmp.lt.s32.totalorder %s16, 3
      %p120 = pnand %p118, %p119
      %p121 = pneg %p120
      // Predicated region
      $region9: #{tpu_custom_call.1} parent=5 // pred_check
        _
      $region10: #{tpu_custom_call.1} parent=5 // pred_check_branch
        %123 = sbr.rel (%p120) target = $region12
      $region11: #{tpu_custom_call.1} parent=5 // pred_region
        %s124 = ssub.s32 %s16, 1
        // Predicated region
        $region13: #{tpu_custom_call.1} parent=11 // pred_check
          %p125 = pneg %p63
        $region14: #{tpu_custom_call.1} parent=11 // pred_check_branch
          %127 = sbr.rel (%p125) target = $region16
        $region15: #{tpu_custom_call.1} parent=11 // pred_region
          %s129 = ssub.s32 1024, 1024
          %130 = vsyncadd [#allocation6], %s129
          %s131 = sshll.u32 [#allocation5], 4
          %s132 = int_to_ptr.vmem [resolvable:$true] %s131
          %137 = dma.hbm_to_vmem [thread:$0]  %s1, 1024, %s132, [#allocation6], 64, 64, 4
        $region16: #{tpu_custom_call.1} parent=11 // pred_fallthru
          _
        // Predicated region
        $region17: #{tpu_custom_call.1} parent=11 // pred_check
          %p138 = pneg %p84
        $region18: #{tpu_custom_call.1} parent=11 // pred_check_branch
          %140 = sbr.rel (%p138) target = $region20
        $region19: #{tpu_custom_call.1} parent=11 // pred_region
          _
        $region20: #{tpu_custom_call.1} parent=11 // pred_fallthru
          _
      $region12: #{tpu_custom_call.1} parent=5 // pred_fallthru
        _
      %p141 = scmp.lt.s32.totalorder %s16, 2
      // Predicated region
      $region21: #{tpu_custom_call.1} parent=5 // pred_check
        %p142 = pneg %p141
      $region22: #{tpu_custom_call.1} parent=5 // pred_check_branch
        %144 = sbr.rel (%p142) target = $region24
      $region23: #{tpu_custom_call.1} parent=5 // pred_region
        // Predicated region
        $region25: #{tpu_custom_call.1} parent=23 // pred_check
          %p145 = pneg %p36
        $region26: #{tpu_custom_call.1} parent=23 // pred_check_branch
          %147 = sbr.rel (%p145) target = $region28
        $region27: #{tpu_custom_call.1} parent=23 // pred_region
          %s148 = sand.u32 %s26, 1
          %s149 = scalar_lea.sflag [#allocation3], %s148
          %s150 = sand.u32 %s26, 1
          %s151 = smul.addr %s150, 128
          %s152 = scalar_lea.vmem [#allocation2], %s151
          %s153 = smul.u32 32, %s16
          %s155 = ssub.s32 2048, 2048
          %156 = vsyncadd %s149, %s155
          %s157 = smul.addr %s153, 64
          %s158 = scalar_lea.hbm %s0, %s157
          %s159 = sshll.u32 %s152, 4
          %s160 = int_to_ptr.vmem [resolvable:$true] %s159
          %165 = dma.hbm_to_vmem [thread:$0]  %s158, 2048, %s160, %s149, 64, 64, 4
        $region28: #{tpu_custom_call.1} parent=23 // pred_fallthru
          _
      $region24: #{tpu_custom_call.1} parent=5 // pred_fallthru
        _
      %p166 = scmp.le.s32.totalorder 1, %s16
      %p167 = scmp.lt.s32.totalorder %s16, 3
      %p168 = pnand %p166, %p167
      %p169 = pneg %p168
      // Predicated region
      $region29: #{tpu_custom_call.1} parent=5 // pred_check
        _
      $region30: #{tpu_custom_call.1} parent=5 // pred_check_branch
        %171 = sbr.rel (%p168) target = $region32
      $region31: #{tpu_custom_call.1} parent=5 // pred_region
        %s172 = ssub.s32 %s16, 1
        %s173 = sand.u32 %s29, 1
        %s174 = scalar_lea.sflag [#allocation3], %s173
        %s175 = sand.u32 %s29, 1
        %s176 = smul.addr %s175, 128
        %s177 = scalar_lea.vmem [#allocation2], %s176
        // Predicated region
        $region33: #{tpu_custom_call.1} parent=31 // pred_check
          %p178 = pneg %p42
        $region34: #{tpu_custom_call.1} parent=31 // pred_check_branch
          %180 = sbr.rel (%p178) target = $region36
        $region35: #{tpu_custom_call.1} parent=31 // pred_region
          %181 = dma.done %s174, 2048
        $region36: #{tpu_custom_call.1} parent=31 // pred_fallthru
          _
        // Predicated region
        $region37: #{tpu_custom_call.1} parent=31 // pred_check
          %p182 = pneg %p63
        $region38: #{tpu_custom_call.1} parent=31 // pred_check_branch
          %184 = sbr.rel (%p182) target = $region40
        $region39: #{tpu_custom_call.1} parent=31 // pred_region
          %185 = dma.done [#allocation6], 1024
        $region40: #{tpu_custom_call.1} parent=31 // pred_fallthru
          _
        %s186 = sand.u32 %s29, 1
        %s187 = scalar_lea.sflag [#allocation3], %s186
        %s188 = sand.u32 %s29, 1
        %s189 = smul.addr %s188, 128
        %s190 = scalar_lea.vmem [#allocation2], %s189
        %p191 = pneg %p42
        %p192 = pneg %p39
        %p193 = pneg %p63
        %p194 = pneg %p60
        %p195 = pneg %p84
        %p196 = pneg %p81
        %p197 = pneg %p110
        %p198 = pneg %p107
        %s199 = sand.u32 %s97, 1
        %s200 = scalar_lea.sflag [#allocation4], %s199
        %s201 = sand.u32 %s97, 1
        %s202 = smul.addr %s201, 128
        %s203 = scalar_lea.vmem [#allocation7], %s202
        %s204 = smul.u32 32, %s21
        %s205 = smul.u32 32, %s21
        %v207 = vld [vmem:[%s177] sm:$0xf]
        %v208 = vld [vmem:[%s177 + $0x4] sm:$0xf]
        %v209 = vld [vmem:[%s177 + $0x8] sm:$0xf]
        %v210 = vld [vmem:[%s177 + $0xc] sm:$0xf]
        %v211 = vld [vmem:[%s177 + $0x10] sm:$0xf]
        %v212 = vld [vmem:[%s177 + $0x14] sm:$0xf]
        %v213 = vld [vmem:[%s177 + $0x18] sm:$0xf]
        %v214 = vld [vmem:[%s177 + $0x1c] sm:$0xf]
        %v215 = vld [vmem:[%s177 + $0x20] sm:$0xf]
        %v216 = vld [vmem:[%s177 + $0x24] sm:$0xf]
        %v217 = vld [vmem:[%s177 + $0x28] sm:$0xf]
        %v218 = vld [vmem:[%s177 + $0x2c] sm:$0xf]
        %v219 = vld [vmem:[%s177 + $0x30] sm:$0xf]
        %v220 = vld [vmem:[%s177 + $0x34] sm:$0xf]
        %v221 = vld [vmem:[%s177 + $0x38] sm:$0xf]
        %v222 = vld [vmem:[%s177 + $0x3c] sm:$0xf]
        %v223 = vld [vmem:[%s177 + $0x40] sm:$0xf]
        %v224 = vld [vmem:[%s177 + $0x44] sm:$0xf]
        %v225 = vld [vmem:[%s177 + $0x48] sm:$0xf]
        %v226 = vld [vmem:[%s177 + $0x4c] sm:$0xf]
        %v227 = vld [vmem:[%s177 + $0x50] sm:$0xf]
        %v228 = vld [vmem:[%s177 + $0x54] sm:$0xf]
        %v229 = vld [vmem:[%s177 + $0x58] sm:$0xf]
        %v230 = vld [vmem:[%s177 + $0x5c] sm:$0xf]
        %v231 = vld [vmem:[%s177 + $0x60] sm:$0xf]
        %v232 = vld [vmem:[%s177 + $0x64] sm:$0xf]
        %v233 = vld [vmem:[%s177 + $0x68] sm:$0xf]
        %v234 = vld [vmem:[%s177 + $0x6c] sm:$0xf]
        %v235 = vld [vmem:[%s177 + $0x70] sm:$0xf]
        %v236 = vld [vmem:[%s177 + $0x74] sm:$0xf]
        %v237 = vld [vmem:[%s177 + $0x78] sm:$0xf]
        %v238 = vld [vmem:[%s177 + $0x7c] sm:$0xf]
        %v239 = vld [vmem:[#allocation5] sm:$0xf]
        %v240 = vld [vmem:[#allocation5 + $0x4] sm:$0xf]
        %v241 = vld [vmem:[#allocation5 + $0x8] sm:$0xf]
        %v242 = vld [vmem:[#allocation5 + $0xc] sm:$0xf]
        %v243 = vld [vmem:[#allocation5 + $0x10] sm:$0xf]
        %v244 = vld [vmem:[#allocation5 + $0x14] sm:$0xf]
        %v245 = vld [vmem:[#allocation5 + $0x18] sm:$0xf]
        %v246 = vld [vmem:[#allocation5 + $0x1c] sm:$0xf]
        %v247 = vld [vmem:[#allocation5 + $0x20] sm:$0xf]
        %v248 = vld [vmem:[#allocation5 + $0x24] sm:$0xf]
        %v249 = vld [vmem:[#allocation5 + $0x28] sm:$0xf]
        %v250 = vld [vmem:[#allocation5 + $0x2c] sm:$0xf]
        %v251 = vld [vmem:[#allocation5 + $0x30] sm:$0xf]
        %v252 = vld [vmem:[#allocation5 + $0x34] sm:$0xf]
        %v253 = vld [vmem:[#allocation5 + $0x38] sm:$0xf]
        %v254 = vld [vmem:[#allocation5 + $0x3c] sm:$0xf]
        %v255 = vld [vmem:[%s2] sm:$0x1]
        %v257 = vlaneseq
        %v258 = vshrl.u32 %v257, 7
        %v259 = vsub.s32 0, %v258
        %v260 = vrot.slane %v255, %v259
        %v294 = vunpack.c.l.b16 %v207
        %v295 = vunpack.c.l.b16 %v208
        %v296 = vunpack.c.l.b16 %v209
        %v297 = vunpack.c.l.b16 %v210
        %v298 = vunpack.c.l.b16 %v211
        %v299 = vunpack.c.l.b16 %v212
        %v300 = vunpack.c.l.b16 %v213
        %v301 = vunpack.c.l.b16 %v214
        %v302 = vunpack.c.l.b16 %v215
        %v303 = vunpack.c.l.b16 %v216
        %v304 = vunpack.c.l.b16 %v217
        %v305 = vunpack.c.l.b16 %v218
        %v306 = vunpack.c.l.b16 %v219
        %v307 = vunpack.c.l.b16 %v220
        %v308 = vunpack.c.l.b16 %v221
        %v309 = vunpack.c.l.b16 %v222
        %v310 = vunpack.c.l.b16 %v223
        %v311 = vunpack.c.l.b16 %v224
        %v312 = vunpack.c.l.b16 %v225
        %v313 = vunpack.c.l.b16 %v226
        %v314 = vunpack.c.l.b16 %v227
        %v315 = vunpack.c.l.b16 %v228
        %v316 = vunpack.c.l.b16 %v229
        %v317 = vunpack.c.l.b16 %v230
        %v318 = vunpack.c.l.b16 %v231
        %v319 = vunpack.c.l.b16 %v232
        %v320 = vunpack.c.l.b16 %v233
        %v321 = vunpack.c.l.b16 %v234
        %v322 = vunpack.c.l.b16 %v235
        %v323 = vunpack.c.l.b16 %v236
        %v324 = vunpack.c.l.b16 %v237
        %v325 = vunpack.c.l.b16 %v238
        %v326 = vpack.c.b16 %v295, %v294
        %v327 = vpack.c.b16 %v297, %v296
        %v328 = vpack.c.b16 %v299, %v298
        %v329 = vpack.c.b16 %v301, %v300
        %v330 = vpack.c.b16 %v303, %v302
        %v331 = vpack.c.b16 %v305, %v304
        %v332 = vpack.c.b16 %v307, %v306
        %v333 = vpack.c.b16 %v309, %v308
        %v334 = vpack.c.b16 %v311, %v310
        %v335 = vpack.c.b16 %v313, %v312
        %v336 = vpack.c.b16 %v315, %v314
        %v337 = vpack.c.b16 %v317, %v316
        %v338 = vpack.c.b16 %v319, %v318
        %v339 = vpack.c.b16 %v321, %v320
        %v340 = vpack.c.b16 %v323, %v322
        %v341 = vpack.c.b16 %v325, %v324
        %v374 = vunpack.c.l.b16 %v239
        %v375 = vunpack.c.l.b16 %v240
        %v376 = vunpack.c.l.b16 %v241
        %v377 = vunpack.c.l.b16 %v242
        %v378 = vunpack.c.l.b16 %v243
        %v379 = vunpack.c.l.b16 %v244
        %v380 = vunpack.c.l.b16 %v245
        %v381 = vunpack.c.l.b16 %v246
        %v382 = vunpack.c.l.b16 %v247
        %v383 = vunpack.c.l.b16 %v248
        %v384 = vunpack.c.l.b16 %v249
        %v385 = vunpack.c.l.b16 %v250
        %v386 = vunpack.c.l.b16 %v251
        %v387 = vunpack.c.l.b16 %v252
        %v388 = vunpack.c.l.b16 %v253
        %v389 = vunpack.c.l.b16 %v254
        %v390 = vpack.c.b16 %v375, %v374
        %v391 = vpack.c.b16 %v377, %v376
        %v392 = vpack.c.b16 %v379, %v378
        %v393 = vpack.c.b16 %v381, %v380
        %v394 = vpack.c.b16 %v383, %v382
        %v395 = vpack.c.b16 %v385, %v384
        %v396 = vpack.c.b16 %v387, %v386
        %v397 = vpack.c.b16 %v389, %v388
        %406 = vmatprep.subr.bf16.mxu0 0
        %407 = vmatpush1.bf16.msra.mxu0 %v390
        %408 = vmatprep.subr.bf16.mxu0 0
        %409 = vmatpush1.bf16.msra.mxu0 %v391
        %410 = vmatprep.subr.bf16.mxu0 0
        %411 = vmatpush1.bf16.msra.mxu0 %v392
        %412 = vmatprep.subr.bf16.mxu0 0
        %413 = vmatpush1.bf16.msra.mxu0 %v393
        %414 = vmatprep.subr.bf16.mxu0 0
        %415 = vmatpush1.bf16.msra.mxu0 %v394
        %416 = vmatprep.subr.bf16.mxu0 0
        %417 = vmatpush1.bf16.msra.mxu0 %v395
        %418 = vmatprep.subr.bf16.mxu0 0
        %419 = vmatpush1.bf16.msra.mxu0 %v396
        %420 = vmatprep.subr.bf16.mxu0 0
        %421 = vmatpush1.bf16.msra.mxu0 %v397
        %422 = vmatprep.subr.bf16.mxu0 0
        %423 = vmatpush1.bf16.msra.mxu0 0
        %424 = vmatprep.subr.bf16.mxu0 0
        %425 = vmatpush1.bf16.msra.mxu0 0
        %426 = vmatprep.subr.bf16.mxu0 0
        %427 = vmatpush1.bf16.msra.mxu0 0
        %428 = vmatprep.subr.bf16.mxu0 0
        %429 = vmatpush1.bf16.msra.mxu0 0
        %430 = vmatprep.subr.bf16.mxu0 0
        %431 = vmatpush1.bf16.msra.mxu0 0
        %432 = vmatprep.subr.bf16.mxu0 0
        %433 = vmatpush1.bf16.msra.mxu0 0
        %434 = vmatprep.subr.bf16.mxu0 0
        %435 = vmatpush1.bf16.msra.mxu0 0
        %436 = vmatprep.subr.bf16.mxu0 0
        %437 = vmatpush1.bf16.msra.mxu0 0
        %438 = vmatprep.mubr.bf16.mxu0 0
        %439 = vmatmul.mubr.bf16.gmra.mrb[0].mxu0 %v326
        %v440 = vpop.f32.mrb[0].mxu0
        %v441 = vadd.f32 %v260, %v440
        %v442 = vpop.f32.mrb[0].mxu0
        %v443 = vpop.f32.mrb[0].mxu0
        %v444 = vadd.f32 %v260, %v443
        %v445 = vpop.f32.mrb[0].mxu0
        %446 = vmatprep.mubr.bf16.mxu0 0
        %447 = vmatmul.mubr.bf16.gmra.mrb[0].mxu0 %v327
        %v448 = vpop.f32.mrb[0].mxu0
        %v449 = vadd.f32 %v260, %v448
        %v450 = vpop.f32.mrb[0].mxu0
        %v451 = vpop.f32.mrb[0].mxu0
        %v452 = vadd.f32 %v260, %v451
        %v453 = vpop.f32.mrb[0].mxu0
        %454 = vmatprep.mubr.bf16.mxu0 0
        %455 = vmatmul.mubr.bf16.gmra.mrb[0].mxu0 %v328
        %v456 = vpop.f32.mrb[0].mxu0
        %v457 = vadd.f32 %v260, %v456
        %v458 = vpop.f32.mrb[0].mxu0
        %v459 = vpop.f32.mrb[0].mxu0
        %v460 = vadd.f32 %v260, %v459
        %v461 = vpop.f32.mrb[0].mxu0
        %462 = vmatprep.mubr.bf16.mxu0 0
        %463 = vmatmul.mubr.bf16.gmra.mrb[0].mxu0 %v329
        %v464 = vpop.f32.mrb[0].mxu0
        %v465 = vadd.f32 %v260, %v464
        %v466 = vpop.f32.mrb[0].mxu0
        %v467 = vpop.f32.mrb[0].mxu0
        %v468 = vadd.f32 %v260, %v467
        %v469 = vpop.f32.mrb[0].mxu0
        %470 = vmatprep.mubr.bf16.mxu0 0
        %471 = vmatmul.mubr.bf16.gmra.mrb[0].mxu0 %v330
        %v472 = vpop.f32.mrb[0].mxu0
        %v473 = vadd.f32 %v260, %v472
        %v474 = vpop.f32.mrb[0].mxu0
        %v475 = vpop.f32.mrb[0].mxu0
        %v476 = vadd.f32 %v260, %v475
        %v477 = vpop.f32.mrb[0].mxu0
        %478 = vmatprep.mubr.bf16.mxu0 0
        %479 = vmatmul.mubr.bf16.gmra.mrb[0].mxu0 %v331
        %v480 = vpop.f32.mrb[0].mxu0
        %v481 = vadd.f32 %v260, %v480
        %v482 = vpop.f32.mrb[0].mxu0
        %v483 = vpop.f32.mrb[0].mxu0
        %v484 = vadd.f32 %v260, %v483
        %v485 = vpop.f32.mrb[0].mxu0
        %486 = vmatprep.mubr.bf16.mxu0 0
        %487 = vmatmul.mubr.bf16.gmra.mrb[0].mxu0 %v332
        %v488 = vpop.f32.mrb[0].mxu0
        %v489 = vadd.f32 %v260, %v488
        %v490 = vpop.f32.mrb[0].mxu0
        %v491 = vpop.f32.mrb[0].mxu0
        %v492 = vadd.f32 %v260, %v491
        %v493 = vpop.f32.mrb[0].mxu0
        %494 = vmatprep.mubr.bf16.mxu0 0
        %495 = vmatmul.mubr.bf16.gmra.mrb[0].mxu0 %v333
        %v496 = vpop.f32.mrb[0].mxu0
        %v497 = vadd.f32 %v260, %v496
        %v498 = vpop.f32.mrb[0].mxu0
        %v499 = vpop.f32.mrb[0].mxu0
        %v500 = vadd.f32 %v260, %v499
        %v501 = vpop.f32.mrb[0].mxu0
        %502 = vmatprep.mubr.bf16.mxu0 0
        %503 = vmatmul.mubr.bf16.gmra.mrb[0].mxu0 %v334
        %v504 = vpop.f32.mrb[0].mxu0
        %v505 = vadd.f32 %v260, %v504
        %v506 = vpop.f32.mrb[0].mxu0
        %v507 = vpop.f32.mrb[0].mxu0
        %v508 = vadd.f32 %v260, %v507
        %v509 = vpop.f32.mrb[0].mxu0
        %510 = vmatprep.mubr.bf16.mxu0 0
        %511 = vmatmul.mubr.bf16.gmra.mrb[0].mxu0 %v335
        %v512 = vpop.f32.mrb[0].mxu0
        %v513 = vadd.f32 %v260, %v512
        %v514 = vpop.f32.mrb[0].mxu0
        %v515 = vpop.f32.mrb[0].mxu0
        %v516 = vadd.f32 %v260, %v515
        %v517 = vpop.f32.mrb[0].mxu0
        %518 = vmatprep.mubr.bf16.mxu0 0
        %519 = vmatmul.mubr.bf16.gmra.mrb[0].mxu0 %v336
        %v520 = vpop.f32.mrb[0].mxu0
        %v521 = vadd.f32 %v260, %v520
        %v522 = vpop.f32.mrb[0].mxu0
        %v523 = vpop.f32.mrb[0].mxu0
        %v524 = vadd.f32 %v260, %v523
        %v525 = vpop.f32.mrb[0].mxu0
        %526 = vmatprep.mubr.bf16.mxu0 0
        %527 = vmatmul.mubr.bf16.gmra.mrb[0].mxu0 %v337
        %v528 = vpop.f32.mrb[0].mxu0
        %v529 = vadd.f32 %v260, %v528
        %v530 = vpop.f32.mrb[0].mxu0
        %v531 = vpop.f32.mrb[0].mxu0
        %v532 = vadd.f32 %v260, %v531
        %v533 = vpop.f32.mrb[0].mxu0
        %534 = vmatprep.mubr.bf16.mxu0 0
        %535 = vmatmul.mubr.bf16.gmra.mrb[0].mxu0 %v338
        %v536 = vpop.f32.mrb[0].mxu0
        %v537 = vadd.f32 %v260, %v536
        %v538 = vpop.f32.mrb[0].mxu0
        %v539 = vpop.f32.mrb[0].mxu0
        %v540 = vadd.f32 %v260, %v539
        %v541 = vpop.f32.mrb[0].mxu0
        %542 = vmatprep.mubr.bf16.mxu0 0
        %543 = vmatmul.mubr.bf16.gmra.mrb[0].mxu0 %v339
        %v544 = vpop.f32.mrb[0].mxu0
        %v545 = vadd.f32 %v260, %v544
        %v546 = vpop.f32.mrb[0].mxu0
        %v547 = vpop.f32.mrb[0].mxu0
        %v548 = vadd.f32 %v260, %v547
        %v549 = vpop.f32.mrb[0].mxu0
        %550 = vmatprep.mubr.bf16.mxu0 0
        %551 = vmatmul.mubr.bf16.gmra.mrb[0].mxu0 %v340
        %v552 = vpop.f32.mrb[0].mxu0
        %v553 = vadd.f32 %v260, %v552
        %v554 = vpop.f32.mrb[0].mxu0
        %v555 = vpop.f32.mrb[0].mxu0
        %v556 = vadd.f32 %v260, %v555
        %v557 = vpop.f32.mrb[0].mxu0
        %558 = vmatprep.mubr.bf16.mxu0 0
        %559 = vmatmul.mubr.bf16.gmra.mrb[0].mxu0 %v341
        %v560 = vpop.f32.mrb[0].mxu0
        %v561 = vadd.f32 %v260, %v560
        %v562 = vpop.f32.mrb[0].mxu0
        %v563 = vpop.f32.mrb[0].mxu0
        %v564 = vadd.f32 %v260, %v563
        %v565 = vpop.f32.mrb[0].mxu0
        %566 = vdwg.mxu0
        %v567 = vmax.f32 %v441, 0.0
        %v568 = vmax.f32 %v444, 0.0
        %v569 = vmax.f32 %v449, 0.0
        %v570 = vmax.f32 %v452, 0.0
        %v571 = vmax.f32 %v457, 0.0
        %v572 = vmax.f32 %v460, 0.0
        %v573 = vmax.f32 %v465, 0.0
        %v574 = vmax.f32 %v468, 0.0
        %v575 = vmax.f32 %v473, 0.0
        %v576 = vmax.f32 %v476, 0.0
        %v577 = vmax.f32 %v481, 0.0
        %v578 = vmax.f32 %v484, 0.0
        %v579 = vmax.f32 %v489, 0.0
        %v580 = vmax.f32 %v492, 0.0
        %v581 = vmax.f32 %v497, 0.0
        %v582 = vmax.f32 %v500, 0.0
        %v583 = vmax.f32 %v505, 0.0
        %v584 = vmax.f32 %v508, 0.0
        %v585 = vmax.f32 %v513, 0.0
        %v586 = vmax.f32 %v516, 0.0
        %v587 = vmax.f32 %v521, 0.0
        %v588 = vmax.f32 %v524, 0.0
        %v589 = vmax.f32 %v529, 0.0
        %v590 = vmax.f32 %v532, 0.0
        %v591 = vmax.f32 %v537, 0.0
        %v592 = vmax.f32 %v540, 0.0
        %v593 = vmax.f32 %v545, 0.0
        %v594 = vmax.f32 %v548, 0.0
        %v595 = vmax.f32 %v553, 0.0
        %v596 = vmax.f32 %v556, 0.0
        %v597 = vmax.f32 %v561, 0.0
        %v598 = vmax.f32 %v564, 0.0
        %v599 = vpack.c.bf16 %v568, %v567
        %v600 = vpack.c.bf16 %v570, %v569
        %v601 = vpack.c.bf16 %v572, %v571
        %v602 = vpack.c.bf16 %v574, %v573
        %v603 = vpack.c.bf16 %v576, %v575
        %v604 = vpack.c.bf16 %v578, %v577
        %v605 = vpack.c.bf16 %v580, %v579
        %v606 = vpack.c.bf16 %v582, %v581
        %v607 = vpack.c.bf16 %v584, %v583
        %v608 = vpack.c.bf16 %v586, %v585
        %v609 = vpack.c.bf16 %v588, %v587
        %v610 = vpack.c.bf16 %v590, %v589
        %v611 = vpack.c.bf16 %v592, %v591
        %v612 = vpack.c.bf16 %v594, %v593
        %v613 = vpack.c.bf16 %v596, %v595
        %v614 = vpack.c.bf16 %v598, %v597
        %v631 = vunpack.c.l.b16 %v599
        %v632 = vunpack.c.h.b16 %v599
        %v633 = vunpack.c.l.b16 %v600
        %v634 = vunpack.c.h.b16 %v600
        %v635 = vunpack.c.l.b16 %v601
        %v636 = vunpack.c.h.b16 %v601
        %v637 = vunpack.c.l.b16 %v602
        %v638 = vunpack.c.h.b16 %v602
        %v639 = vunpack.c.l.b16 %v603
        %v640 = vunpack.c.h.b16 %v603
        %v641 = vunpack.c.l.b16 %v604
        %v642 = vunpack.c.h.b16 %v604
        %v643 = vunpack.c.l.b16 %v605
        %v644 = vunpack.c.h.b16 %v605
        %v645 = vunpack.c.l.b16 %v606
        %v646 = vunpack.c.h.b16 %v606
        %v647 = vunpack.c.l.b16 %v607
        %v648 = vunpack.c.h.b16 %v607
        %v649 = vunpack.c.l.b16 %v608
        %v650 = vunpack.c.h.b16 %v608
        %v651 = vunpack.c.l.b16 %v609
        %v652 = vunpack.c.h.b16 %v609
        %v653 = vunpack.c.l.b16 %v610
        %v654 = vunpack.c.h.b16 %v610
        %v655 = vunpack.c.l.b16 %v611
        %v656 = vunpack.c.h.b16 %v611
        %v657 = vunpack.c.l.b16 %v612
        %v658 = vunpack.c.h.b16 %v612
        %v659 = vunpack.c.l.b16 %v613
        %v660 = vunpack.c.h.b16 %v613
        %v661 = vunpack.c.l.b16 %v614
        %v662 = vunpack.c.h.b16 %v614
        %v663 = vpack.c.b16 %v631, %v631
        %v664 = vpack.c.b16 %v632, %v632
        %v665 = vpack.c.b16 %v633, %v633
        %v666 = vpack.c.b16 %v634, %v634
        %v667 = vpack.c.b16 %v635, %v635
        %v668 = vpack.c.b16 %v636, %v636
        %v669 = vpack.c.b16 %v637, %v637
        %v670 = vpack.c.b16 %v638, %v638
        %v671 = vpack.c.b16 %v639, %v639
        %v672 = vpack.c.b16 %v640, %v640
        %v673 = vpack.c.b16 %v641, %v641
        %v674 = vpack.c.b16 %v642, %v642
        %v675 = vpack.c.b16 %v643, %v643
        %v676 = vpack.c.b16 %v644, %v644
        %v677 = vpack.c.b16 %v645, %v645
        %v678 = vpack.c.b16 %v646, %v646
        %v679 = vpack.c.b16 %v647, %v647
        %v680 = vpack.c.b16 %v648, %v648
        %v681 = vpack.c.b16 %v649, %v649
        %v682 = vpack.c.b16 %v650, %v650
        %v683 = vpack.c.b16 %v651, %v651
        %v684 = vpack.c.b16 %v652, %v652
        %v685 = vpack.c.b16 %v653, %v653
        %v686 = vpack.c.b16 %v654, %v654
        %v687 = vpack.c.b16 %v655, %v655
        %v688 = vpack.c.b16 %v656, %v656
        %v689 = vpack.c.b16 %v657, %v657
        %v690 = vpack.c.b16 %v658, %v658
        %v691 = vpack.c.b16 %v659, %v659
        %v692 = vpack.c.b16 %v660, %v660
        %v693 = vpack.c.b16 %v661, %v661
        %v694 = vpack.c.b16 %v662, %v662
        %727 = vst [vmem:[%s203] sm:$0xf] %v663
        %728 = vst [vmem:[%s203 + $0x4] sm:$0xf] %v664
        %729 = vst [vmem:[%s203 + $0x8] sm:$0xf] %v665
        %730 = vst [vmem:[%s203 + $0xc] sm:$0xf] %v666
        %731 = vst [vmem:[%s203 + $0x10] sm:$0xf] %v667
        %732 = vst [vmem:[%s203 + $0x14] sm:$0xf] %v668
        %733 = vst [vmem:[%s203 + $0x18] sm:$0xf] %v669
        %734 = vst [vmem:[%s203 + $0x1c] sm:$0xf] %v670
        %735 = vst [vmem:[%s203 + $0x20] sm:$0xf] %v671
        %736 = vst [vmem:[%s203 + $0x24] sm:$0xf] %v672
        %737 = vst [vmem:[%s203 + $0x28] sm:$0xf] %v673
        %738 = vst [vmem:[%s203 + $0x2c] sm:$0xf] %v674
        %739 = vst [vmem:[%s203 + $0x30] sm:$0xf] %v675
        %740 = vst [vmem:[%s203 + $0x34] sm:$0xf] %v676
        %741 = vst [vmem:[%s203 + $0x38] sm:$0xf] %v677
        %742 = vst [vmem:[%s203 + $0x3c] sm:$0xf] %v678
        %743 = vst [vmem:[%s203 + $0x40] sm:$0xf] %v679
        %744 = vst [vmem:[%s203 + $0x44] sm:$0xf] %v680
        %745 = vst [vmem:[%s203 + $0x48] sm:$0xf] %v681
        %746 = vst [vmem:[%s203 + $0x4c] sm:$0xf] %v682
        %747 = vst [vmem:[%s203 + $0x50] sm:$0xf] %v683
        %748 = vst [vmem:[%s203 + $0x54] sm:$0xf] %v684
        %749 = vst [vmem:[%s203 + $0x58] sm:$0xf] %v685
        %750 = vst [vmem:[%s203 + $0x5c] sm:$0xf] %v686
        %751 = vst [vmem:[%s203 + $0x60] sm:$0xf] %v687
        %752 = vst [vmem:[%s203 + $0x64] sm:$0xf] %v688
        %753 = vst [vmem:[%s203 + $0x68] sm:$0xf] %v689
        %754 = vst [vmem:[%s203 + $0x6c] sm:$0xf] %v690
        %755 = vst [vmem:[%s203 + $0x70] sm:$0xf] %v691
        %756 = vst [vmem:[%s203 + $0x74] sm:$0xf] %v692
        %757 = vst [vmem:[%s203 + $0x78] sm:$0xf] %v693
        %758 = vst [vmem:[%s203 + $0x7c] sm:$0xf] %v694
        %s759 = sand.u32 %s97, 1
        %s760 = scalar_lea.sflag [#allocation4], %s759
        %s761 = sand.u32 %s97, 1
        %s762 = smul.addr %s761, 128
        %s763 = scalar_lea.vmem [#allocation7], %s762
        // Predicated region
        $region41: #{tpu_custom_call.1} parent=31 // pred_check
          %p764 = pneg %p107
        $region42: #{tpu_custom_call.1} parent=31 // pred_check_branch
          %766 = sbr.rel (%p764) target = $region44
        $region43: #{tpu_custom_call.1} parent=31 // pred_region
          %s767 = smul.u32 32, %s21
          %s769 = ssub.s32 2048, 2048
          %770 = vsyncadd %s760, %s769
          %s771 = smul.addr %s767, 64
          %s772 = scalar_lea.hbm %s3, %s771
          %s773 = sshll.u32 %s763, 4
          %s774 = int_to_ptr.vmem [resolvable:$true] %s773
          %779 = dma.vmem_to_hbm [thread:$0]  %s774, 2048, %s772, %s760, 64, 64, 4
        $region44: #{tpu_custom_call.1} parent=31 // pred_fallthru
          _
      $region32: #{tpu_custom_call.1} parent=5 // pred_fallthru
        _
      %p780 = scmp.le.s32.totalorder 2, %s16
      // Predicated region
      $region45: #{tpu_custom_call.1} parent=5 // pred_check
        %p781 = pneg %p780
      $region46: #{tpu_custom_call.1} parent=5 // pred_check_branch
        %783 = sbr.rel (%p781) target = $region48
      $region47: #{tpu_custom_call.1} parent=5 // pred_region
        %s784 = ssub.s32 %s16, 2
        // Predicated region
        $region49: #{tpu_custom_call.1} parent=47 // pred_check
          %p785 = pneg %p113
        $region50: #{tpu_custom_call.1} parent=47 // pred_check_branch
          %787 = sbr.rel (%p785) target = $region52
        $region51: #{tpu_custom_call.1} parent=47 // pred_region
          %s788 = sand.u32 %s98, 1
          %s789 = scalar_lea.sflag [#allocation4], %s788
          %s790 = sand.u32 %s98, 1
          %s791 = smul.addr %s790, 128
          %s792 = scalar_lea.vmem [#allocation7], %s791
          %793 = dma.done %s789, 2048
        $region52: #{tpu_custom_call.1} parent=47 // pred_fallthru
          _
      $region48: #{tpu_custom_call.1} parent=5 // pred_fallthru
        _
    $region6: #{tpu_custom_call.1} parent=1 // loop_footer
      %s20 = sadd.s32 1, %s16
    $region7: #{tpu_custom_call.1} parent=1 // loop_footer_branch
      %15 = sbr.rel target = $region3
    $region8: #{tpu_custom_call.1} parent=1 // loop_exit
      _
    %794 = vsyncpa [#allocation3], 1
    %s795 = scalar_lea.sflag [#allocation3], 1
    %796 = vsyncpa %s795, 1
    %797 = vsyncpa [#allocation6], 1
    %798 = vsyncpa [#allocation4], 1
    %s799 = scalar_lea.sflag [#allocation4], 1
    %800 = vsyncpa %s799, 1

</llo_original>
